<compile_context>
chip_gen: v6e
topology: v6e:2x2x1
jax: 0.10.0
libtpu: 0.0.40
codegen_flags: <defaults>
</compile_context>

<pallas_src>
import math

import jax
import jax.numpy as jnp
from jax.experimental import pallas as pl
from jax.experimental.pallas import tpu as pltpu


def _round_up(x: int, m: int) -> int:
    return ((x + m - 1) // m) * m


def _kernel(t_ref, freqs_ref, w1c_ref, w1s_ref, w2_ref, bias_ref, o_ref):
    """One batch tile of: sinusoid-embed -> Linear -> SiLU -> Linear."""
    # t: (Bt, 1) f32, freqs: (1, half) f32
    args = t_ref[...] * freqs_ref[...]                  # (Bt, half) f32
    cos_e = jnp.cos(args)
    sin_e = jnp.sin(args)

    w_dtype = w1c_ref.dtype                             # f32 or bf16 weights

    # First Linear, split over the [cos | sin] halves (no lane concatenate;
    # weights are pre-split in the wrapper, so no in-kernel w1 slicing).
    h = jnp.dot(cos_e.astype(w_dtype), w1c_ref[...],
                preferred_element_type=jnp.float32)
    h = h + jnp.dot(sin_e.astype(w_dtype), w1s_ref[...],
                    preferred_element_type=jnp.float32)
    h = h + bias_ref[0:1, :].astype(jnp.float32)

    # SiLU in f32 (EUP sigmoid + VPU mul) -- v5e-safe.
    h = h * jax.nn.sigmoid(h)

    # Second Linear.
    out = jnp.dot(h.astype(w_dtype), w2_ref[...],
                  preferred_element_type=jnp.float32)
    out = out + bias_ref[1:2, :].astype(jnp.float32)
    o_ref[...] = out.astype(o_ref.dtype)


def _cost_estimate(B, hidden, half, weight_bytes):
    flops = 2 * B * (2 * half * hidden + hidden * hidden) + B * (half + 3 * hidden)
    transcendentals = B * (2 * half + hidden)            # cos, sin, sigmoid
    bytes_accessed = weight_bytes + 4 * (B + half + 2 * hidden + B * hidden)
    return pl.CostEstimate(flops=flops,
                           transcendentals=transcendentals,
                           bytes_accessed=bytes_accessed)


def timestep_embedder(timesteps, w1, b1, w2, b2, *, max_period=10000,
                      weights_dtype=jnp.bfloat16, block_b=1024):
    """
    timesteps: (B,) f32
    w1: (embed_size, hidden), b1: (hidden,)   [x @ W + b layout, == PyTorch W.T]
    w2: (hidden, hidden),     b2: (hidden,)
    weights_dtype: MXU-operand dtype for the weights (default bf16 on all
        TPU generations; pass jnp.float32 for bit-accurate f32 matmuls).
    returns: (B, hidden) f32
    """
    B = timesteps.shape[0]
    embed_size, hidden = w1.shape
    half = embed_size // 2

    # PyTorch's odd-embed zero column multiplies w1's trailing row by zero,
    # so dropping it (and splitting at `half`) is exact.
    w1 = w1[:2 * half]
    if weights_dtype is not None:
        w1 = w1.astype(weights_dtype)
        w2 = w2.astype(weights_dtype)
    w1_cos = w1[:half]                                   # (half, hidden)
    w1_sin = w1[half:]                                   # (half, hidden)

    t2d = timesteps.reshape(B, 1).astype(jnp.float32)
    freqs = jnp.exp(
        (-math.log(max_period)) * jnp.arange(half, dtype=jnp.float32) / half
    ).reshape(1, half)
    biases = jnp.stack([b1, b2]).astype(jnp.float32)     # (2, hidden)

    weight_bytes = (w1_cos.size + w1_sin.size) * w1_cos.dtype.itemsize \
        + w2.size * w2.dtype.itemsize
    cost = _cost_estimate(B, hidden, half, weight_bytes)

    if B <= block_b:
        # Tiny-batch path: single invocation, everything resident in VMEM.
        vmem = pl.BlockSpec(memory_space=pltpu.MemorySpace.VMEM)
        return pl.pallas_call(
            _kernel,
            out_shape=jax.ShapeDtypeStruct((B, hidden), jnp.float32),
            in_specs=[vmem] * 6,
            out_specs=vmem,
            cost_estimate=cost,
        )(t2d, freqs, w1_cos, w1_sin, w2, biases)

    # ---- Large-batch path: 1-D ragged grid over batch tiles. ----------------
    # Keep at least two (roughly balanced) blocks so the "parallel" batch axis
    # can shard across both v7x TensorCores.
    block_b = max(8, min(block_b, _round_up(pl.cdiv(B, 2), 8)))
    n_blocks = pl.cdiv(B, block_b)                       # ragged last block OK

    # Grid-invariant weights: no point double-buffering them if they are big;
    # at DiT scale also give the compiler an explicit VMEM budget.
    large_weights = weight_bytes > (2 << 20)
    if large_weights:
        w_spec_kwargs = dict(pipeline_mode=pl.Buffered(1))
        vmem_limit = min(
            weight_bytes                                  # single-buffered weights
            + 2 * 4 * block_b * (1 + hidden)              # double-buffered t/out tiles
            + 4 * (half + 2 * hidden)                     # freqs + biases
            + (8 << 20),                                  # headroom / internal scratch
            120 << 20)
    else:
        w_spec_kwargs = {}
        vmem_limit = None

    out = pl.pallas_call(
        _kernel,
        out_shape=jax.ShapeDtypeStruct((B, hidden), jnp.float32),
        grid_spec=pltpu.PrefetchScalarGridSpec(
            num_scalar_prefetch=0,
            grid=(n_blocks,),
            in_specs=[
                pl.BlockSpec((block_b, 1), lambda i: (i, 0)),
                pl.BlockSpec((1, half), lambda i: (0, 0)),
                pl.BlockSpec((half, hidden), lambda i: (0, 0), **w_spec_kwargs),
                pl.BlockSpec((half, hidden), lambda i: (0, 0), **w_spec_kwargs),
                pl.BlockSpec((hidden, hidden), lambda i: (0, 0), **w_spec_kwargs),
                pl.BlockSpec((2, hidden), lambda i: (0, 0)),
            ],
            out_specs=pl.BlockSpec((block_b, hidden), lambda i: (i, 0)),
        ),
        compiler_params=pltpu.CompilerParams(
            dimension_semantics=("parallel",),
            vmem_limit_bytes=vmem_limit),
        cost_estimate=cost,
    )(t2d, freqs, w1_cos, w1_sin, w2, biases)
    return out


def _reference(timesteps, w1, b1, w2, b2, max_period=10000):
    half = w1.shape[0] // 2
    freqs = jnp.exp(-math.log(max_period) * jnp.arange(half, dtype=jnp.float32) / half)
    args = timesteps[:, None] * freqs[None]
    emb = jnp.concatenate([jnp.cos(args), jnp.sin(args)], axis=-1)
    h = emb @ w1[:2 * half] + b1
    h = h * jax.nn.sigmoid(h)
    return h @ w2 + b2


if __name__ == "__main__":
    # Small shapes consistent with the module: batch=8, embed_size=256, hidden=32
    B = 8
    EMBED = 256
    HIDDEN = 32

    key = jax.random.PRNGKey(0)
    k_t, k_w1, k_b1, k_w2, k_b2, k_t2, k_t3 = jax.random.split(key, 7)

    timesteps = jax.random.uniform(k_t, (B,), jnp.float32, 0.0, 1000.0)

    # Deterministic parameter init (PyTorch-Linear-style uniform bounds).
    lim1 = 1.0 / math.sqrt(EMBED)
    lim2 = 1.0 / math.sqrt(HIDDEN)
    w1 = jax.random.uniform(k_w1, (EMBED, HIDDEN), jnp.float32, -lim1, lim1)
    b1 = jax.random.uniform(k_b1, (HIDDEN,), jnp.float32, -lim1, lim1)
    w2 = jax.random.uniform(k_w2, (HIDDEN, HIDDEN), jnp.float32, -lim2, lim2)
    b2 = jax.random.uniform(k_b2, (HIDDEN,), jnp.float32, -lim2, lim2)

    # 1) Tiny-batch path, exact f32 weights -> tight tolerance.
    out = jax.block_until_ready(
        timestep_embedder(timesteps, w1, b1, w2, b2, weights_dtype=jnp.float32))
    ref = _reference(timesteps, w1, b1, w2, b2)
    assert out.shape == (B, HIDDEN), out.shape
    assert jnp.allclose(out, ref, atol=1e-4, rtol=1e-4), float(jnp.abs(out - ref).max())

    # 2) Tiny-batch path, default bf16 MXU weights -> looser tolerance.
    out_bf = jax.block_until_ready(timestep_embedder(timesteps, w1, b1, w2, b2))
    assert jnp.allclose(out_bf, ref, atol=2e-2, rtol=2e-2), \
        float(jnp.abs(out_bf - ref).max())

    # 3) Gridded path with a ragged last block (B=3000, blocks of 1024),
    #    f32 weights for a bit-tight check of the masked-tail handling.
    B2 = 3000
    timesteps2 = jax.random.uniform(k_t2, (B2,), jnp.float32, 0.0, 1000.0)
    out2 = jax.block_until_ready(
        timestep_embedder(timesteps2, w1, b1, w2, b2, weights_dtype=jnp.float32))
    ref2 = _reference(timesteps2, w1, b1, w2, b2)
    assert out2.shape == (B2, HIDDEN), out2.shape
    assert jnp.allclose(out2, ref2, atol=1e-4, rtol=1e-4), \
        float(jnp.abs(out2 - ref2).max())

    # 4) Gridded path exercising the >=2-block megacore clamp (B=1500 ->
    #    block_b clamped to 752 -> 2 blocks), default bf16 weights.
    B3 = 1500
    timesteps3 = jax.random.uniform(k_t3, (B3,), jnp.float32, 0.0, 1000.0)
    out3 = jax.block_until_ready(timestep_embedder(timesteps3, w1, b1, w2, b2))
    ref3 = _reference(timesteps3, w1, b1, w2, b2)
    assert out3.shape == (B3, HIDDEN), out3.shape
    assert jnp.allclose(out3, ref3, atol=2e-2, rtol=2e-2), \
        float(jnp.abs(out3 - ref3).max())

    print("KERNEL_OK")
</pallas_src>

<mosaic_0001>
module attributes {stable_mosaic.version = 11 : i64} {
  func.func @_kernel(%arg0: memref<8x1xf32, #tpu.memory_space<vmem>>, %arg1: memref<1x128xf32, #tpu.memory_space<vmem>>, %arg2: memref<128x32xf32, #tpu.memory_space<vmem>>, %arg3: memref<128x32xf32, #tpu.memory_space<vmem>>, %arg4: memref<32x32xf32, #tpu.memory_space<vmem>>, %arg5: memref<2x32xf32, #tpu.memory_space<vmem>>, %arg6: memref<8x32xf32, #tpu.memory_space<vmem>>) attributes {dimension_semantics = [], scalar_prefetch = 0 : i64, scratch_operands = 0 : i64, tpu.core_type = #tpu.core_type<tc>} {
    %c0 = arith.constant 0 : index
    %c0_0 = arith.constant 0 : index
    %0 = vector.load %arg0[%c0, %c0_0] : memref<8x1xf32, #tpu.memory_space<vmem>>, vector<8x1xf32>
    %c0_1 = arith.constant 0 : index
    %c0_2 = arith.constant 0 : index
    %1 = vector.load %arg1[%c0_1, %c0_2] : memref<1x128xf32, #tpu.memory_space<vmem>>, vector<1x128xf32>
    %2 = vector.broadcast %0 : vector<8x1xf32> to vector<8x128xf32>
    %3 = vector.broadcast %1 : vector<1x128xf32> to vector<8x128xf32>
    %4 = arith.mulf %2, %3 : vector<8x128xf32>
    %5 = math.cos %4 : vector<8x128xf32>
    %6 = math.sin %4 : vector<8x128xf32>
    %c0_3 = arith.constant 0 : index
    %c0_4 = arith.constant 0 : index
    %7 = vector.load %arg2[%c0_3, %c0_4] : memref<128x32xf32, #tpu.memory_space<vmem>>, vector<128x32xf32>
    %cst = arith.constant dense<0.000000e+00> : vector<8x32xf32>
    %8 = tpu.matmul %5, %7, %cst {dimension_numbers = #tpu.dot_dimension_numbers<[1], [0], [0], [1], [0, 0, 1, 1], [], []>} : vector<8x128xf32>, vector<128x32xf32>, vector<8x32xf32> -> vector<8x32xf32>
    %c0_5 = arith.constant 0 : index
    %c0_6 = arith.constant 0 : index
    %9 = vector.load %arg3[%c0_5, %c0_6] : memref<128x32xf32, #tpu.memory_space<vmem>>, vector<128x32xf32>
    %cst_7 = arith.constant dense<0.000000e+00> : vector<8x32xf32>
    %10 = tpu.matmul %6, %9, %cst_7 {dimension_numbers = #tpu.dot_dimension_numbers<[1], [0], [0], [1], [0, 0, 1, 1], [], []>} : vector<8x128xf32>, vector<128x32xf32>, vector<8x32xf32> -> vector<8x32xf32>
    %11 = arith.addf %8, %10 : vector<8x32xf32>
    %c0_8 = arith.constant 0 : index
    %c0_9 = arith.constant 0 : index
    %12 = vector.load %arg5[%c0_8, %c0_9] : memref<2x32xf32, #tpu.memory_space<vmem>>, vector<1x32xf32>
    %13 = vector.broadcast %12 : vector<1x32xf32> to vector<8x32xf32>
    %14 = arith.addf %11, %13 : vector<8x32xf32>
    %15 = arith.negf %14 : vector<8x32xf32>
    %16 = math.exp %15 : vector<8x32xf32>
    %cst_10 = arith.constant 1.000000e+00 : f32
    %17 = vector.broadcast %cst_10 : f32 to vector<8x32xf32>
    %18 = arith.addf %17, %16 : vector<8x32xf32>
    %19 = arith.divf %17, %18 : vector<8x32xf32>
    %20 = arith.mulf %14, %19 : vector<8x32xf32>
    %c0_11 = arith.constant 0 : index
    %c0_12 = arith.constant 0 : index
    %21 = vector.load %arg4[%c0_11, %c0_12] : memref<32x32xf32, #tpu.memory_space<vmem>>, vector<32x32xf32>
    %cst_13 = arith.constant dense<0.000000e+00> : vector<8x32xf32>
    %22 = tpu.matmul %20, %21, %cst_13 {dimension_numbers = #tpu.dot_dimension_numbers<[1], [0], [0], [1], [0, 0, 1, 1], [], []>} : vector<8x32xf32>, vector<32x32xf32>, vector<8x32xf32> -> vector<8x32xf32>
    %c1 = arith.constant 1 : index
    %c0_14 = arith.constant 0 : index
    %23 = vector.load %arg5[%c1, %c0_14] : memref<2x32xf32, #tpu.memory_space<vmem>>, vector<1x32xf32>
    %24 = vector.broadcast %23 : vector<1x32xf32> to vector<8x32xf32>
    %25 = arith.addf %22, %24 : vector<8x32xf32>
    %c0_15 = arith.constant 0 : index
    %c0_16 = arith.constant 0 : index
    %26 = vector.load %arg6[%c0_15, %c0_16] : memref<8x32xf32, #tpu.memory_space<vmem>>, vector<8x32xf32>
    tpu.vector_store %arg6[%c0_15, %c0_16], %25 {strides = array<i32>} : memref<8x32xf32, #tpu.memory_space<vmem>>, vector<8x32xf32>,
    return
  }
}

</mosaic_0001>

<llo_original>
// kernel: tpu_custom_call.1
$region0: #{tpu_custom_call.1}
  #allocation0 [shape = 'u32[]', space=smem, size = 0x4, offset = 0x4, fixed_abs, tag = 'smem constant byte address 0x4 - core index']
  #allocation1 [shape = 'u32[144,128]{1,0:T(1,128)}', space=vmem, size = 0x12000, scoped, tag = 'internal scratch']
  %s0 = inlined_call_operand.vmem [shape: f32[8,1], index: 0, kind: input, shape index: {}]
  %s1 = inlined_call_operand.vmem [shape: f32[1,128], index: 1, kind: input, shape index: {}]
  %s2 = inlined_call_operand.vmem [shape: f32[128,32], index: 2, kind: input, shape index: {}]
  %s3 = inlined_call_operand.vmem [shape: f32[128,32], index: 3, kind: input, shape index: {}]
  %s4 = inlined_call_operand.vmem [shape: f32[32,32], index: 4, kind: input, shape index: {}]
  %s5 = inlined_call_operand.vmem [shape: f32[2,32], index: 5, kind: input, shape index: {}]
  %s6 = inlined_call_operand.hbm [shape: f32[8,32], index: 6, kind: output, shape index: {}]
  %s7 = sld [smem:[#allocation0]]
  $region34: #{tpu_custom_call.1} parent=0
    _
  %s9 = ssub.s32 1, %s7
  %s10 = scalar_select 0, %s9, %s7
  $region1: #{tpu_custom_call.1} parent=0
    #allocation2 [shape = 'u8[4096]{0}', space=vmem, size = 0x1000, scoped, tag = 'output window, operand 0, single buffered']
    #allocation3 [shape = 's32[1]{0}', space=sflag, size = 0x4, scoped, tag = 'scoped memory for tpu_custom_call.1']
    %11 = vsyncpa [#allocation3], 0
    // Predicated region
    $region2: #{tpu_custom_call.1} parent=1 // pred_check
      _
    $region3: #{tpu_custom_call.1} parent=1 // pred_check_branch
      %13 = sbr.rel (0) target = $region5
    $region4: #{tpu_custom_call.1} parent=1 // pred_region
      _
    $region5: #{tpu_custom_call.1} parent=1 // pred_fallthru
      _
    // Predicated region
    $region6: #{tpu_custom_call.1} parent=1 // pred_check
      _
    $region7: #{tpu_custom_call.1} parent=1 // pred_check_branch
      %15 = sbr.rel (0) target = $region9
    $region8: #{tpu_custom_call.1} parent=1 // pred_region
      _
    $region9: #{tpu_custom_call.1} parent=1 // pred_fallthru
      _
    // Predicated region
    $region10: #{tpu_custom_call.1} parent=1 // pred_check
      _
    $region11: #{tpu_custom_call.1} parent=1 // pred_check_branch
      %17 = sbr.rel (0) target = $region13
    $region12: #{tpu_custom_call.1} parent=1 // pred_region
      _
    $region13: #{tpu_custom_call.1} parent=1 // pred_fallthru
      _
    // Predicated region
    $region14: #{tpu_custom_call.1} parent=1 // pred_check
      _
    $region15: #{tpu_custom_call.1} parent=1 // pred_check_branch
      %19 = sbr.rel (0) target = $region17
    $region16: #{tpu_custom_call.1} parent=1 // pred_region
      _
    $region17: #{tpu_custom_call.1} parent=1 // pred_fallthru
      _
    // Predicated region
    $region18: #{tpu_custom_call.1} parent=1 // pred_check
      _
    $region19: #{tpu_custom_call.1} parent=1 // pred_check_branch
      %21 = sbr.rel (0) target = $region21
    $region20: #{tpu_custom_call.1} parent=1 // pred_region
      _
    $region21: #{tpu_custom_call.1} parent=1 // pred_fallthru
      _
    // Predicated region
    $region22: #{tpu_custom_call.1} parent=1 // pred_check
      _
    $region23: #{tpu_custom_call.1} parent=1 // pred_check_branch
      %23 = sbr.rel (0) target = $region25
    $region24: #{tpu_custom_call.1} parent=1 // pred_region
      _
    $region25: #{tpu_custom_call.1} parent=1 // pred_fallthru
      _
    %v24 = vld [vmem:[%s0] sm:$0xff]
    %v25 = vld [vmem:[%s1] sm:$0x1]
    %27 = vset.pattern.permute.xlu0 0
    %28 = vperm.xlu0 %27, %v24
    %v29 = vpop.permute.xlu0 %28
    %v32 = vlaneseq
    %v33 = vshrl.u32 %v32, 7
    %v34 = vsub.s32 0, %v33
    %v35 = vrot.slane %v25, %v34
    %v37 = vmul.f32 %v29, %v35
    %v38 = vand.u32 2147483647, %v37
    %vm39 = vcmp.le.f32.partialorder %v38, 0.7853982
    %vm40 = vcmp.lt.s32.totalorder %v37, 0
    %v41 = vand.u32 %v37, 2139095040
    %v42 = vshrl.u32 %v41, 23
    %v43 = vsub.s32 %v42, 127
    %v44 = vand.u32 2147483647, %v37
    %v45 = vand.u32 %v44, 8388607
    %v46 = vor.u32 %v45, 8388608
    %v47 = vsub.s32 0, %v46
    %v48 = vadd.s32 %v43, 1
    %vm49 = vcmp.gt.s32.totalorder %v48, 0
    %v50 = vsel %vm49, %v48, 0
    %v51 = vshrl.u32 %v50, 5
    %v52 = vand.u32 %v50, 31
    %v53 = vsub.s32 32, %v52
    %v54 = vshrl.u32 683565275, %v53
    %v55 = vshll.u32 683565275, %v52
    %v56 = vshrl.u32 2475754826, %v53
    %v57 = vor.u32 %v55, %v56
    %v58 = vshll.u32 2475754826, %v52
    %v59 = vshrl.u32 2131351028, %v53
    %v60 = vor.u32 %v58, %v59
    %v61 = vshll.u32 2131351028, %v52
    %v62 = vshrl.u32 2102212464, %v53
    %v63 = vor.u32 %v61, %v62
    %v64 = vshll.u32 2102212464, %v52
    %v65 = vshrl.u32 920167782, %v53
    %v66 = vor.u32 %v64, %v65
    %v67 = vshll.u32 920167782, %v52
    %v68 = vshrl.u32 1326507024, %v53
    %v69 = vor.u32 %v67, %v68
    %vm70 = vcmp.lt.s32.totalorder %v51, 1
    %vm71 = vcmp.lt.s32.totalorder %v51, 2
    %vm72 = vcmp.lt.s32.totalorder %v51, 3
    %vm73 = vcmp.lt.s32.totalorder %v51, 4
    %v74 = vsel %vm70, %v54, %v57
    %v75 = vsel %vm73, %v63, 2102212464
    %v76 = vsel %vm72, %v60, %v75
    %v77 = vsel %vm71, %v74, %v76
    %v78 = vsel %vm70, %v57, %v60
    %v79 = vsel %vm73, %v66, 920167782
    %v80 = vsel %vm72, %v63, %v79
    %v81 = vsel %vm71, %v78, %v80
    %v82 = vsel %vm70, %v60, %v63
    %v83 = vsel %vm73, %v69, 1326507024
    %v84 = vsel %vm72, %v66, %v83
    %v85 = vsel %vm71, %v82, %v84
    %v86 = vshll.u32 %v46, 8
    %v87 = vmul.u32.u64.compose %v86, %v85
    %v88 = vextract.low.u32 %v87
    %v89 = vextract.high.u32 %v87
    %v90 = vmul.u32.u64.compose %v86, %v81
    %v91 = vextract.low.u32 %v90
    %v92 = vextract.high.u32 %v90
    %v93 = vmul.u32 %v86, %v77
    %v94 = vadd.s32 %v89, %v91
    %vm95 = vc.u32 %v89, %v91
    %v96 = vadd.s32 %v92, 1
    %v97 = vsel %vm95, %v96, %v92
    %v98 = vadd.s32 %v93, %v97
    %v99 = vadd.s32 %v98, 536870912
    %v100 = vshrl.u32 %v99, 30
    %v101 = vshll.u32 %v100, 30
    %v102 = vsub.s32 %v98, %v101
    %vm103 = vcmp.lt.s32.totalorder %v102, 0
    %v104 = vsub.s32 0, %v102
    %v105 = vsel %vm103, %v104, %v102
    %v106 = vclz %v105
    %v107 = vsub.s32 %v106, 2
    %vm108 = vcmp.gt.s32.totalorder 0, %v107
    %v109 = vsel %vm108, 0, %v107
    %v110 = vsub.s32 32, %v109
    %v111 = vshll.u32 %v102, %v109
    %v112 = vshrl.u32 %v94, %v110
    %v113 = vor.u32 %v111, %v112
    %v114 = vsub.s32 4294967266, %v109
    %v115 = vadd.s32 %v114, 127
    %v116 = vshll.u32 %v115, 23
    %v117 = vor.u32 4788187, %v116
    %v118 = vand.u32 2147483647, %v117
    %v120 = vcvt.s32.f32 %v113
    %v121 = vmul.f32 %v120, %v118
    %v122 = vxor.u32 %v121, 2147483648
    %v123 = vsel %vm40, %v122, %v121
    %v124 = vsub.s32 4, %v100
    %v125 = vsel %vm40, %v124, %v100
    %v126 = vsel %vm39, %v37, %v123
    %v127 = vsel %vm39, 0, %v125
    %v128 = vcosq.f32.pop %v126
    %v129 = vsinq.f32.pop %v126
    %vm130 = vweird.f32 %v37
    %v131 = vand.u32 %v127, 3
    %vm132 = vcmp.lt.s32.totalorder %v131, 2
    %vm133 = vcmp.eq.s32.totalorder %v131, 0
    %v134 = vxor.u32 %v129, 2147483648
    %v135 = vsel %vm133, %v128, %v134
    %vm136 = vcmp.eq.s32.totalorder %v131, 2
    %v137 = vxor.u32 %v128, 2147483648
    %v138 = vsel %vm136, %v137, %v129
    %v139 = vsel %vm132, %v135, %v138
    %v140 = vsel %vm130, nan, %v139
    %v141 = vand.u32 2147483647, %v37
    %vm142 = vcmp.le.f32.partialorder %v141, 0.7853982
    %vm143 = vcmp.lt.s32.totalorder %v37, 0
    %v144 = vand.u32 %v37, 2139095040
    %v145 = vshrl.u32 %v144, 23
    %v146 = vsub.s32 %v145, 127
    %v147 = vand.u32 2147483647, %v37
    %v148 = vand.u32 %v147, 8388607
    %v149 = vor.u32 %v148, 8388608
    %v150 = vsub.s32 0, %v149
    %v151 = vadd.s32 %v146, 1
    %vm152 = vcmp.gt.s32.totalorder %v151, 0
    %v153 = vsel %vm152, %v151, 0
    %v154 = vshrl.u32 %v153, 5
    %v155 = vand.u32 %v153, 31
    %v156 = vsub.s32 32, %v155
    %v157 = vshrl.u32 683565275, %v156
    %v158 = vshll.u32 683565275, %v155
    %v159 = vshrl.u32 2475754826, %v156
    %v160 = vor.u32 %v158, %v159
    %v161 = vshll.u32 2475754826, %v155
    %v162 = vshrl.u32 2131351028, %v156
    %v163 = vor.u32 %v161, %v162
    %v164 = vshll.u32 2131351028, %v155
    %v165 = vshrl.u32 2102212464, %v156
    %v166 = vor.u32 %v164, %v165
    %v167 = vshll.u32 2102212464, %v155
    %v168 = vshrl.u32 920167782, %v156
    %v169 = vor.u32 %v167, %v168
    %v170 = vshll.u32 920167782, %v155
    %v171 = vshrl.u32 1326507024, %v156
    %v172 = vor.u32 %v170, %v171
    %vm173 = vcmp.lt.s32.totalorder %v154, 1
    %vm174 = vcmp.lt.s32.totalorder %v154, 2
    %vm175 = vcmp.lt.s32.totalorder %v154, 3
    %vm176 = vcmp.lt.s32.totalorder %v154, 4
    %v177 = vsel %vm173, %v157, %v160
    %v178 = vsel %vm176, %v166, 2102212464
    %v179 = vsel %vm175, %v163, %v178
    %v180 = vsel %vm174, %v177, %v179
    %v181 = vsel %vm173, %v160, %v163
    %v182 = vsel %vm176, %v169, 920167782
    %v183 = vsel %vm175, %v166, %v182
    %v184 = vsel %vm174, %v181, %v183
    %v185 = vsel %vm173, %v163, %v166
    %v186 = vsel %vm176, %v172, 1326507024
    %v187 = vsel %vm175, %v169, %v186
    %v188 = vsel %vm174, %v185, %v187
    %v189 = vshll.u32 %v149, 8
    %v190 = vmul.u32.u64.compose %v189, %v188
    %v191 = vextract.low.u32 %v190
    %v192 = vextract.high.u32 %v190
    %v193 = vmul.u32.u64.compose %v189, %v184
    %v194 = vextract.low.u32 %v193
    %v195 = vextract.high.u32 %v193
    %v196 = vmul.u32 %v189, %v180
    %v197 = vadd.s32 %v192, %v194
    %vm198 = vc.u32 %v192, %v194
    %v199 = vadd.s32 %v195, 1
    %v200 = vsel %vm198, %v199, %v195
    %v201 = vadd.s32 %v196, %v200
    %v202 = vadd.s32 %v201, 536870912
    %v203 = vshrl.u32 %v202, 30
    %v204 = vshll.u32 %v203, 30
    %v205 = vsub.s32 %v201, %v204
    %vm206 = vcmp.lt.s32.totalorder %v205, 0
    %v207 = vsub.s32 0, %v205
    %v208 = vsel %vm206, %v207, %v205
    %v209 = vclz %v208
    %v210 = vsub.s32 %v209, 2
    %vm211 = vcmp.gt.s32.totalorder 0, %v210
    %v212 = vsel %vm211, 0, %v210
    %v213 = vsub.s32 32, %v212
    %v214 = vshll.u32 %v205, %v212
    %v215 = vshrl.u32 %v197, %v213
    %v216 = vor.u32 %v214, %v215
    %v217 = vsub.s32 4294967266, %v212
    %v218 = vadd.s32 %v217, 127
    %v219 = vshll.u32 %v218, 23
    %v220 = vor.u32 4788187, %v219
    %v221 = vand.u32 2147483647, %v220
    %v223 = vcvt.s32.f32 %v216
    %v224 = vmul.f32 %v223, %v221
    %v225 = vxor.u32 %v224, 2147483648
    %v226 = vsel %vm143, %v225, %v224
    %v227 = vsub.s32 4, %v203
    %v228 = vsel %vm143, %v227, %v203
    %v229 = vsel %vm142, %v37, %v226
    %v230 = vsel %vm142, 0, %v228
    %v231 = vcosq.f32.pop %v229
    %v232 = vsinq.f32.pop %v229
    %vm233 = vweird.f32 %v37
    %v234 = vadd.s32 %v230, 3
    %v235 = vand.u32 %v234, 3
    %vm236 = vcmp.lt.s32.totalorder %v235, 2
    %vm237 = vcmp.eq.s32.totalorder %v235, 0
    %v238 = vxor.u32 %v232, 2147483648
    %v239 = vsel %vm237, %v231, %v238
    %vm240 = vcmp.eq.s32.totalorder %v235, 2
    %v241 = vxor.u32 %v231, 2147483648
    %v242 = vsel %vm240, %v241, %v232
    %v243 = vsel %vm236, %v239, %v242
    %v244 = vsel %vm233, nan, %v243
    %v245 = vld [vmem:[%s2] sm:$0xff]
    %v246 = vld [vmem:[%s2 + $0x8] sm:$0xff]
    %v247 = vld [vmem:[%s2 + $0x10] sm:$0xff]
    %v248 = vld [vmem:[%s2 + $0x18] sm:$0xff]
    %v249 = vld [vmem:[%s2 + $0x20] sm:$0xff]
    %v250 = vld [vmem:[%s2 + $0x28] sm:$0xff]
    %v251 = vld [vmem:[%s2 + $0x30] sm:$0xff]
    %v252 = vld [vmem:[%s2 + $0x38] sm:$0xff]
    %v253 = vld [vmem:[%s2 + $0x40] sm:$0xff]
    %v254 = vld [vmem:[%s2 + $0x48] sm:$0xff]
    %v255 = vld [vmem:[%s2 + $0x50] sm:$0xff]
    %v256 = vld [vmem:[%s2 + $0x58] sm:$0xff]
    %v257 = vld [vmem:[%s2 + $0x60] sm:$0xff]
    %v258 = vld [vmem:[%s2 + $0x68] sm:$0xff]
    %v259 = vld [vmem:[%s2 + $0x70] sm:$0xff]
    %v260 = vld [vmem:[%s2 + $0x78] sm:$0xff]
    %v261 = vld [vmem:[%s3] sm:$0xff]
    %v262 = vld [vmem:[%s3 + $0x8] sm:$0xff]
    %v263 = vld [vmem:[%s3 + $0x10] sm:$0xff]
    %v264 = vld [vmem:[%s3 + $0x18] sm:$0xff]
    %v265 = vld [vmem:[%s3 + $0x20] sm:$0xff]
    %v266 = vld [vmem:[%s3 + $0x28] sm:$0xff]
    %v267 = vld [vmem:[%s3 + $0x30] sm:$0xff]
    %v268 = vld [vmem:[%s3 + $0x38] sm:$0xff]
    %v269 = vld [vmem:[%s3 + $0x40] sm:$0xff]
    %v270 = vld [vmem:[%s3 + $0x48] sm:$0xff]
    %v271 = vld [vmem:[%s3 + $0x50] sm:$0xff]
    %v272 = vld [vmem:[%s3 + $0x58] sm:$0xff]
    %v273 = vld [vmem:[%s3 + $0x60] sm:$0xff]
    %v274 = vld [vmem:[%s3 + $0x68] sm:$0xff]
    %v275 = vld [vmem:[%s3 + $0x70] sm:$0xff]
    %v276 = vld [vmem:[%s3 + $0x78] sm:$0xff]
    %277 = vmatprep.subr.mxu0 0.0
    %278 = vmatpush1.msra.mxu0 %v276
    %279 = vmatprep.subr.mxu0 0.0
    %280 = vmatpush1.msra.mxu0 %v275
    %281 = vmatprep.subr.mxu0 0.0
    %282 = vmatpush1.msra.mxu0 %v274
    %283 = vmatprep.subr.mxu0 0.0
    %284 = vmatpush1.msra.mxu0 %v273
    %285 = vmatprep.subr.mxu0 0.0
    %286 = vmatpush1.msra.mxu0 %v272
    %287 = vmatprep.subr.mxu0 0.0
    %288 = vmatpush1.msra.mxu0 %v271
    %289 = vmatprep.subr.mxu0 0.0
    %290 = vmatpush1.msra.mxu0 %v270
    %291 = vmatprep.subr.mxu0 0.0
    %292 = vmatpush1.msra.mxu0 %v269
    %293 = vmatprep.subr.mxu0 0.0
    %294 = vmatpush1.msra.mxu0 %v268
    %295 = vmatprep.subr.mxu0 0.0
    %296 = vmatpush1.msra.mxu0 %v267
    %297 = vmatprep.subr.mxu0 0.0
    %298 = vmatpush1.msra.mxu0 %v266
    %299 = vmatprep.subr.mxu0 0.0
    %300 = vmatpush1.msra.mxu0 %v265
    %301 = vmatprep.subr.mxu0 0.0
    %302 = vmatpush1.msra.mxu0 %v264
    %303 = vmatprep.subr.mxu0 0.0
    %304 = vmatpush1.msra.mxu0 %v263
    %305 = vmatprep.subr.mxu0 0.0
    %306 = vmatpush1.msra.mxu0 %v262
    %307 = vmatprep.subr.mxu0 0.0
    %308 = vmatpush1.msra.mxu0 %v261
    %309 = vmatprep.subr.mxu0 0.0
    %310 = vmatpush2.msra.mxu0 0.0
    %311 = vmatprep.subr.mxu0 0.0
    %312 = vmatpush2.msra.mxu0 0.0
    %313 = vmatprep.subr.mxu0 0.0
    %314 = vmatpush2.msra.mxu0 0.0
    %315 = vmatprep.subr.mxu0 0.0
    %316 = vmatpush2.msra.mxu0 0.0
    %317 = vmatprep.subr.mxu0 0.0
    %318 = vmatpush2.msra.mxu0 0.0
    %319 = vmatprep.subr.mxu0 0.0
    %320 = vmatpush2.msra.mxu0 0.0
    %321 = vmatprep.subr.mxu0 0.0
    %322 = vmatpush2.msra.mxu0 0.0
    %323 = vmatprep.subr.mxu0 0.0
    %324 = vmatpush2.msra.mxu0 0.0
    %325 = vmatprep.subr.mxu0 0.0
    %326 = vmatpush2.msra.mxu0 0.0
    %327 = vmatprep.subr.mxu0 0.0
    %328 = vmatpush2.msra.mxu0 0.0
    %329 = vmatprep.subr.mxu0 0.0
    %330 = vmatpush2.msra.mxu0 0.0
    %331 = vmatprep.subr.mxu0 0.0
    %332 = vmatpush2.msra.mxu0 0.0
    %333 = vmatprep.subr.mxu0 0.0
    %334 = vmatpush2.msra.mxu0 0.0
    %335 = vmatprep.subr.mxu0 0.0
    %336 = vmatpush2.msra.mxu0 0.0
    %337 = vmatprep.subr.mxu0 0.0
    %338 = vmatpush2.msra.mxu0 0.0
    %339 = vmatprep.subr.mxu0 0.0
    %340 = vmatpush2.msra.mxu0 0.0
    %341 = vmatprep.mubr.f32.mxu0 0.0
    %342 = vmatmul.mubr.f32.gmra.mxu0 %v244
    %v343 = vpop.f32.mrf.mxu0
    %v344 = vadd.f32 0.0, %v343
    %v345 = vpop.f32.mrf.mxu0
    %346 = vdwg.mxu0
    %347 = vmatprep.subr.mxu0 0.0
    %348 = vmatpush1.msra.mxu0 %v260
    %349 = vmatprep.subr.mxu0 0.0
    %350 = vmatpush1.msra.mxu0 %v259
    %351 = vmatprep.subr.mxu0 0.0
    %352 = vmatpush1.msra.mxu0 %v258
    %353 = vmatprep.subr.mxu0 0.0
    %354 = vmatpush1.msra.mxu0 %v257
    %355 = vmatprep.subr.mxu0 0.0
    %356 = vmatpush1.msra.mxu0 %v256
    %357 = vmatprep.subr.mxu0 0.0
    %358 = vmatpush1.msra.mxu0 %v255
    %359 = vmatprep.subr.mxu0 0.0
    %360 = vmatpush1.msra.mxu0 %v254
    %361 = vmatprep.subr.mxu0 0.0
    %362 = vmatpush1.msra.mxu0 %v253
    %363 = vmatprep.subr.mxu0 0.0
    %364 = vmatpush1.msra.mxu0 %v252
    %365 = vmatprep.subr.mxu0 0.0
    %366 = vmatpush1.msra.mxu0 %v251
    %367 = vmatprep.subr.mxu0 0.0
    %368 = vmatpush1.msra.mxu0 %v250
    %369 = vmatprep.subr.mxu0 0.0
    %370 = vmatpush1.msra.mxu0 %v249
    %371 = vmatprep.subr.mxu0 0.0
    %372 = vmatpush1.msra.mxu0 %v248
    %373 = vmatprep.subr.mxu0 0.0
    %374 = vmatpush1.msra.mxu0 %v247
    %375 = vmatprep.subr.mxu0 0.0
    %376 = vmatpush1.msra.mxu0 %v246
    %377 = vmatprep.subr.mxu0 0.0
    %378 = vmatpush1.msra.mxu0 %v245
    %379 = vmatprep.subr.mxu0 0.0
    %380 = vmatpush2.msra.mxu0 0.0
    %381 = vmatprep.subr.mxu0 0.0
    %382 = vmatpush2.msra.mxu0 0.0
    %383 = vmatprep.subr.mxu0 0.0
    %384 = vmatpush2.msra.mxu0 0.0
    %385 = vmatprep.subr.mxu0 0.0
    %386 = vmatpush2.msra.mxu0 0.0
    %387 = vmatprep.subr.mxu0 0.0
    %388 = vmatpush2.msra.mxu0 0.0
    %389 = vmatprep.subr.mxu0 0.0
    %390 = vmatpush2.msra.mxu0 0.0
    %391 = vmatprep.subr.mxu0 0.0
    %392 = vmatpush2.msra.mxu0 0.0
    %393 = vmatprep.subr.mxu0 0.0
    %394 = vmatpush2.msra.mxu0 0.0
    %395 = vmatprep.subr.mxu0 0.0
    %396 = vmatpush2.msra.mxu0 0.0
    %397 = vmatprep.subr.mxu0 0.0
    %398 = vmatpush2.msra.mxu0 0.0
    %399 = vmatprep.subr.mxu0 0.0
    %400 = vmatpush2.msra.mxu0 0.0
    %401 = vmatprep.subr.mxu0 0.0
    %402 = vmatpush2.msra.mxu0 0.0
    %403 = vmatprep.subr.mxu0 0.0
    %404 = vmatpush2.msra.mxu0 0.0
    %405 = vmatprep.subr.mxu0 0.0
    %406 = vmatpush2.msra.mxu0 0.0
    %407 = vmatprep.subr.mxu0 0.0
    %408 = vmatpush2.msra.mxu0 0.0
    %409 = vmatprep.subr.mxu0 0.0
    %410 = vmatpush2.msra.mxu0 0.0
    %411 = vmatprep.mubr.f32.mxu0 0.0
    %412 = vmatmul.mubr.f32.gmra.mxu0 %v140
    %v413 = vpop.f32.mrf.mxu0
    %v414 = vadd.f32 %v344, %v413
    %v415 = vpop.f32.mrf.mxu0
    %416 = vdwg.mxu0
    %v417 = vld [vmem:[%s5] sm:$0x1]
    %v418 = vlaneseq
    %v419 = vshrl.u32 %v418, 7
    %v420 = vsub.s32 0, %v419
    %v421 = vrot.slane %v417, %v420
    %v422 = vadd.f32 %v414, %v421
    %v423 = vxor.u32 %v422, 2147483648
    %v424 = vmul.f32 %v423, 1.442695
    %v425 = vpow.pop %v424
    %v426 = vadd.f32 %v425, 1.0
    %v427 = vrcp.pop %v426
    %v428 = vmul.f32 1.0, %v427
    %v429 = vmul.f32 %v422, %v428
    %v430 = vld [vmem:[%s4] sm:$0xff]
    %v431 = vld [vmem:[%s4 + $0x8] sm:$0xff]
    %v432 = vld [vmem:[%s4 + $0x10] sm:$0xff]
    %v433 = vld [vmem:[%s4 + $0x18] sm:$0xff]
    %v434 = vld [vmem:[%s5 + $0x1] sm:$0x1]
    %v435 = vlaneseq
    %v436 = vshrl.u32 %v435, 7
    %v437 = vsub.s32 0, %v436
    %v438 = vrot.slane %v434, %v437
    %vm439 = vcmask 261120
    %v441 = vsel %vm439, %v429, 0
    %443 = vmatprep.subr.mxu0 0.0
    %444 = vmatpush1.msra.mxu0 0.0
    %445 = vmatprep.subr.mxu0 0.0
    %446 = vmatpush1.msra.mxu0 0.0
    %447 = vmatprep.subr.mxu0 0.0
    %448 = vmatpush1.msra.mxu0 0.0
    %449 = vmatprep.subr.mxu0 0.0
    %450 = vmatpush1.msra.mxu0 0.0
    %451 = vmatprep.subr.mxu0 0.0
    %452 = vmatpush1.msra.mxu0 0.0
    %453 = vmatprep.subr.mxu0 0.0
    %454 = vmatpush1.msra.mxu0 0.0
    %455 = vmatprep.subr.mxu0 0.0
    %456 = vmatpush1.msra.mxu0 0.0
    %457 = vmatprep.subr.mxu0 0.0
    %458 = vmatpush1.msra.mxu0 0.0
    %459 = vmatprep.subr.mxu0 0.0
    %460 = vmatpush1.msra.mxu0 0.0
    %461 = vmatprep.subr.mxu0 0.0
    %462 = vmatpush1.msra.mxu0 0.0
    %463 = vmatprep.subr.mxu0 0.0
    %464 = vmatpush1.msra.mxu0 0.0
    %465 = vmatprep.subr.mxu0 0.0
    %466 = vmatpush1.msra.mxu0 0.0
    %467 = vmatprep.subr.mxu0 0.0
    %468 = vmatpush1.msra.mxu0 %v433
    %469 = vmatprep.subr.mxu0 0.0
    %470 = vmatpush1.msra.mxu0 %v432
    %471 = vmatprep.subr.mxu0 0.0
    %472 = vmatpush1.msra.mxu0 %v431
    %473 = vmatprep.subr.mxu0 0.0
    %474 = vmatpush1.msra.mxu0 %v430
    %475 = vmatprep.subr.mxu0 0.0
    %476 = vmatpush2.msra.mxu0 0.0
    %477 = vmatprep.subr.mxu0 0.0
    %478 = vmatpush2.msra.mxu0 0.0
    %479 = vmatprep.subr.mxu0 0.0
    %480 = vmatpush2.msra.mxu0 0.0
    %481 = vmatprep.subr.mxu0 0.0
    %482 = vmatpush2.msra.mxu0 0.0
    %483 = vmatprep.subr.mxu0 0.0
    %484 = vmatpush2.msra.mxu0 0.0
    %485 = vmatprep.subr.mxu0 0.0
    %486 = vmatpush2.msra.mxu0 0.0
    %487 = vmatprep.subr.mxu0 0.0
    %488 = vmatpush2.msra.mxu0 0.0
    %489 = vmatprep.subr.mxu0 0.0
    %490 = vmatpush2.msra.mxu0 0.0
    %491 = vmatprep.subr.mxu0 0.0
    %492 = vmatpush2.msra.mxu0 0.0
    %493 = vmatprep.subr.mxu0 0.0
    %494 = vmatpush2.msra.mxu0 0.0
    %495 = vmatprep.subr.mxu0 0.0
    %496 = vmatpush2.msra.mxu0 0.0
    %497 = vmatprep.subr.mxu0 0.0
    %498 = vmatpush2.msra.mxu0 0.0
    %499 = vmatprep.subr.mxu0 0.0
    %500 = vmatpush2.msra.mxu0 0.0
    %501 = vmatprep.subr.mxu0 0.0
    %502 = vmatpush2.msra.mxu0 0.0
    %503 = vmatprep.subr.mxu0 0.0
    %504 = vmatpush2.msra.mxu0 0.0
    %505 = vmatprep.subr.mxu0 0.0
    %506 = vmatpush2.msra.mxu0 0.0
    %507 = vmatprep.mubr.f32.mxu0 0.0
    %508 = vmatmul.mubr.f32.gmra.mxu0 %v441
    %v509 = vpop.f32.mrf.mxu0
    %v510 = vadd.f32 %v438, %v509
    %v511 = vpop.f32.mrf.mxu0
    %512 = vdwg.mxu0
    %513 = vst.msk [vmem:[#allocation2] sm:$0xff] %vm439, %v510
    // Predicated region
    $region26: #{tpu_custom_call.1} parent=1 // pred_check
      _
    $region27: #{tpu_custom_call.1} parent=1 // pred_check_branch
      %515 = sbr.rel (0) target = $region29
    $region28: #{tpu_custom_call.1} parent=1 // pred_region
      %s517 = ssub.s32 128, 128
      %518 = vsyncadd [#allocation3], %s517
      %s520 = sshll.u32 [#allocation2], 4
      %s521 = int_to_ptr.vmem [resolvable:$true] %s520
      %523 = dma.vmem_to_hbm [thread:$0]  %s521, 128, %s6, [#allocation3]
    $region29: #{tpu_custom_call.1} parent=1 // pred_fallthru
      _
    // Predicated region
    $region30: #{tpu_custom_call.1} parent=1 // pred_check
      _
    $region31: #{tpu_custom_call.1} parent=1 // pred_check_branch
      %525 = sbr.rel (0) target = $region33
    $region32: #{tpu_custom_call.1} parent=1 // pred_region
      %526 = dma.done [#allocation3], 128
    $region33: #{tpu_custom_call.1} parent=1 // pred_fallthru
      _
    %527 = vsyncpa [#allocation3], 1

</llo_original>
